<compile_context>
chip_gen: v7x
topology: tpu7x:2x2x1
jax: 0.10.0
libtpu: 0.0.40
codegen_flags: <defaults>
</compile_context>

<pallas_src>
import functools
import math

import jax
import jax.numpy as jnp
from jax import lax
from jax.experimental import pallas as pl
from jax.experimental.pallas import tpu as pltpu

_MIB = 1024 * 1024
_LANE = 128
_NEG_SLOPE = 0.2


def _leaky_relu(x):
    return jnp.where(x > 0, x, _NEG_SLOPE * x)


def _physical_vmem_bytes():
    default = 64 * _MIB  # v7x has the smallest VMEM (64 MiB); v5e/v6e have 128.
    try:
        info = pltpu.get_tpu_info()
        for attr in ("vmem_capacity_bytes", "vmem_bytes", "vmem_size_bytes"):
            val = getattr(info, attr, None)
            if val:
                return int(val)
    except Exception:
        pass
    return default


def _round_up(x, m):
    return ((x + m - 1) // m) * m


def _working_set_bytes(tk, tn, c_in, c_out, in_itemsize, out_itemsize):
    adj = 2 * tk * tn * in_itemsize                       # double-buffered adj stream
    node = 2 * c_in * tk * in_itemsize                    # double-buffered node tile
    out = 2 * c_out * tn * out_itemsize                   # double-buffered output tile
    acc = c_in * tn * 4                                   # f32 accumulator scratch
    wb = 2 * (c_out * c_in * in_itemsize + c_out * 4)     # weight + bias
    return adj + node + out + acc + wb


def _pick_tiles(n, c_in, c_out, in_itemsize, out_itemsize, budget):
    ws = functools.partial(_working_set_bytes, c_in=c_in, c_out=c_out,
                           in_itemsize=in_itemsize, out_itemsize=out_itemsize)
    # Small graphs: one full-N block per batch element (no tiling; also covers
    # N < 128 where a lane tile would violate the (8,128) block rule).
    if ws(n, n) <= budget:
        return n, n
    n_up = _round_up(n, _LANE)
    for tn in (1024, 512, 256, 128):            # lane-tile sweet spot 512-1024
        tn_eff = min(tn, n_up)
        for tk in (2048, 1024, 512, 256, 128):  # bound the contraction stream
            tk_eff = min(tk, n_up)
            if ws(tk_eff, tn_eff) <= budget:
                return tk_eff, tn_eff
    return 128, 128


def _gcn_kernel(node_ref, adj_ref, w_ref, b_ref, out_ref, acc_ref, *,
                n_valid, tile_k, mask_k):
    # node_ref: (1, C_in, TK)  adj_ref: (1, TK, TN)  w_ref: (C_out, C_in)
    # b_ref:    (C_out, 1)     out_ref: (1, C_out, TN)  acc_ref: (C_in, TN) f32
    k = pl.program_id(2)

    @pl.when(k == 0)
    def _init():
        acc_ref[...] = jnp.zeros_like(acc_ref)

    node = node_ref[0]   # (C_in, TK), stored dtype
    adj = adj_ref[0]     # (TK, TN), stored dtype
    if mask_k:
        # Last contraction tile may read past N: zero the invalid contraction
        # slice on BOTH operands so stale VMEM (even NaN) never accumulates.
        k_start = k * tile_k
        col = lax.broadcasted_iota(jnp.int32, node.shape, 1)
        node = jnp.where(k_start + col < n_valid, node, jnp.zeros_like(node))
        row = lax.broadcasted_iota(jnp.int32, adj.shape, 0)
        adj = jnp.where(k_start + row < n_valid, adj, jnp.zeros_like(adj))

    # nodes = node @ adj  (MXU, f32 accumulation into VMEM scratch)
    acc_ref[...] += jnp.dot(node, adj, preferred_element_type=jnp.float32)

    @pl.when(k == pl.num_programs(2) - 1)
    def _epilogue():
        h = _leaky_relu(acc_ref[...])                              # f32
        w = w_ref[...].astype(jnp.float32)
        y = jnp.dot(w, h, preferred_element_type=jnp.float32)      # 1x1 Conv1d
        y = _leaky_relu(y + b_ref[...])
        out_ref[0] = y.astype(out_ref.dtype)


def graph_convolution(adj, node, weight, bias, *, tile_n=None, tile_k=None):
    """GCN forward. adj: (B,N,N), node: (B,C_in,N), weight: (C_out,C_in), bias: (C_out,)."""
    B, C_in, N = node.shape
    assert adj.shape == (B, N, N), adj.shape
    C_out = weight.shape[0]
    out_dtype = node.dtype

    in_itemsize = jnp.dtype(adj.dtype).itemsize
    out_itemsize = jnp.dtype(out_dtype).itemsize

    phys_vmem = _physical_vmem_bytes()
    budget = (phys_vmem * 3) // 5           # headroom for pipelining / regalloc
    auto_tk, auto_tn = _pick_tiles(N, C_in, C_out, in_itemsize, out_itemsize, budget)
    tk = tile_k if tile_k is not None else auto_tk
    tn = tile_n if tile_n is not None else auto_tn
    assert tk == N or tk % _LANE == 0, "tile_k must be a multiple of 128 (or == N)"
    assert tn == N or tn % _LANE == 0, "tile_n must be a multiple of 128 (or == N)"

    n_col = pl.cdiv(N, tn)
    n_k = pl.cdiv(N, tk)
    mask_k = (N % tk) != 0                  # last contraction tile is ragged

    bias2d = bias.reshape(C_out, 1).astype(jnp.float32)

    kernel = functools.partial(_gcn_kernel, n_valid=N, tile_k=tk, mask_k=mask_k)

    flops = 2 * B * N * (C_in * N + C_out * C_in)
    bytes_accessed = (
        node.size * in_itemsize * n_col          # node re-streamed per column tile
        + adj.size * in_itemsize                 # dominant O(N^2) stream, read once
        + weight.size * jnp.dtype(weight.dtype).itemsize
        + bias2d.size * 4
        + B * C_out * N * out_itemsize)

    vmem_limit = int(min(
        phys_vmem,
        max(_working_set_bytes(tk, tn, C_in, C_out, in_itemsize, out_itemsize)
            + 8 * _MIB, 32 * _MIB)))

    out = pl.pallas_call(
        kernel,
        out_shape=jax.ShapeDtypeStruct((B, C_out, N), out_dtype),
        grid_spec=pltpu.PrefetchScalarGridSpec(
            num_scalar_prefetch=0,
            # Column-tile axis first so a v7x megacore split uses it when B==1;
            # contraction axis last (accumulator pattern).
            grid=(n_col, B, n_k),
            in_specs=[
                pl.BlockSpec((1, C_in, tk), lambda j, b, k: (b, 0, k)),  # node
                pl.BlockSpec((1, tk, tn), lambda j, b, k: (b, k, j)),    # adj
                pl.BlockSpec((C_out, C_in), lambda j, b, k: (0, 0)),     # weight
                pl.BlockSpec((C_out, 1), lambda j, b, k: (0, 0)),        # bias
            ],
            out_specs=pl.BlockSpec((1, C_out, tn), lambda j, b, k: (b, 0, j)),
            scratch_shapes=[pltpu.VMEM((C_in, tn), jnp.float32)],
        ),
        compiler_params=pltpu.CompilerParams(
            dimension_semantics=("parallel", "parallel", "arbitrary"),
            vmem_limit_bytes=vmem_limit,
        ),
        cost_estimate=pl.CostEstimate(
            flops=flops, transcendentals=0, bytes_accessed=bytes_accessed),
    )(node, adj, weight, bias2d)
    return out


def _reference(adj, node, weight, bias):
    h = jnp.einsum("bcn,bnm->bcm", node, adj, precision=lax.Precision.HIGHEST)
    h = _leaky_relu(h)
    y = jnp.einsum("oc,bcn->bon", weight, h,
                   precision=lax.Precision.HIGHEST) + bias[None, :, None]
    return _leaky_relu(y)


if __name__ == "__main__":
    def run_case(name, B, C_in, C_out, N, dtype, tile_n=None, tile_k=None,
                 atol=2e-3, rtol=2e-3):
        key = jax.random.PRNGKey(0)
        k1, k2, k3, k4 = jax.random.split(key, 4)
        node = jax.random.normal(k1, (B, C_in, N), jnp.float32)
        adj = jax.random.normal(k2, (B, N, N), jnp.float32)
        bound = 1.0 / math.sqrt(C_in)            # Conv1d(k=1, bias=True) init bound
        weight = jax.random.uniform(k3, (C_out, C_in), jnp.float32, -bound, bound)
        bias = jax.random.uniform(k4, (C_out,), jnp.float32, -bound, bound)

        ref = _reference(adj, node, weight, bias)
        out = graph_convolution(adj.astype(dtype), node.astype(dtype),
                                weight.astype(dtype), bias,
                                tile_n=tile_n, tile_k=tile_k)
        out = jax.block_until_ready(out)
        assert out.shape == (B, C_out, N), (name, out.shape)
        assert out.dtype == jnp.dtype(dtype), (name, out.dtype)
        ok = jnp.allclose(out.astype(jnp.float32), ref, atol=atol, rtol=rtol)
        assert bool(ok), f"{name}: mismatch vs reference"

    # Small shape (module's intended scale): single full-N block per batch elem.
    run_case("f32_small", B=2, C_in=16, C_out=32, N=64, dtype=jnp.float32)
    # Force the tiled path: contraction accumulation + column tiling, no raggedness.
    run_case("f32_tiled", B=2, C_in=16, C_out=32, N=256, dtype=jnp.float32,
             tile_n=128, tile_k=128)
    # Ragged edge tiles: in-kernel contraction mask + masked output writeback.
    run_case("f32_ragged", B=1, C_in=16, C_out=32, N=200, dtype=jnp.float32,
             tile_n=128, tile_k=128)
    # bf16-stored operands (real 2x adj DMA saving); f32 accumulation in-kernel.
    run_case("bf16_small", B=2, C_in=16, C_out=32, N=64, dtype=jnp.bfloat16,
             atol=0.5, rtol=0.1)

    print("KERNEL_OK")
</pallas_src>

<mosaic_0001>
module attributes {stable_mosaic.version = 11 : i64} {
  func.func @_gcn_kernel(%arg0: i32, %arg1: i32, %arg2: i32, %arg3: memref<1x16x64xf32, #tpu.memory_space<vmem>>, %arg4: memref<1x64x64xf32, #tpu.memory_space<vmem>>, %arg5: memref<32x16xf32, #tpu.memory_space<vmem>>, %arg6: memref<32x1xf32, #tpu.memory_space<vmem>>, %arg7: memref<1x32x64xf32, #tpu.memory_space<vmem>>, %arg8: memref<16x64xf32, #tpu.memory_space<vmem>>) attributes {dimension_semantics = [#tpu.dimension_semantics<parallel>, #tpu.dimension_semantics<parallel>, #tpu.dimension_semantics<arbitrary>], iteration_bounds = array<i64: 1, 2, 1>, scalar_prefetch = 0 : i64, scratch_operands = 1 : i64, tpu.core_type = #tpu.core_type<tc>, window_params = [{transform_indices = @transform_0, window_bounds = array<i64: 1, 16, 64>}, {transform_indices = @transform_1, window_bounds = array<i64: 1, 64, 64>}, {pipeline_mode = #tpu.pipeline_mode<synchronous>, transform_indices = @transform_2, window_bounds = array<i64: 32, 16>}, {pipeline_mode = #tpu.pipeline_mode<synchronous>, transform_indices = @transform_3, window_bounds = array<i64: 32, 1>}, {transform_indices = @transform_4, window_bounds = array<i64: 1, 32, 64>}]} {
    %c0_i32 = arith.constant 0 : i32
    %0 = arith.cmpi eq, %arg2, %c0_i32 : i32
    %1 = arith.extui %0 : i1 to i32
    %c0_i32_0 = arith.constant 0 : i32
    %2 = arith.cmpi ne, %1, %c0_i32_0 : i32
    scf.if %2 {
      %cst_12 = arith.constant 0.000000e+00 : f32
      %14 = vector.broadcast %cst_12 : f32 to vector<16x64xf32>
      %c0_13 = arith.constant 0 : index
      %c0_14 = arith.constant 0 : index
      %15 = vector.load %arg8[%c0_13, %c0_14] : memref<16x64xf32, #tpu.memory_space<vmem>>, vector<16x64xf32>
      tpu.vector_store %arg8[%c0_13, %c0_14], %14 {strides = array<i32>} : memref<16x64xf32, #tpu.memory_space<vmem>>, vector<16x64xf32>,
    } else {
    }
    %c0 = arith.constant 0 : index
    %c0_1 = arith.constant 0 : index
    %c0_2 = arith.constant 0 : index
    %3 = vector.load %arg3[%c0, %c0_1, %c0_2] : memref<1x16x64xf32, #tpu.memory_space<vmem>>, vector<1x16x64xf32>
    %4 = vector.shape_cast %3 : vector<1x16x64xf32> to vector<16x64xf32>
    %c0_3 = arith.constant 0 : index
    %c0_4 = arith.constant 0 : index
    %c0_5 = arith.constant 0 : index
    %5 = vector.load %arg4[%c0_3, %c0_4, %c0_5] : memref<1x64x64xf32, #tpu.memory_space<vmem>>, vector<1x64x64xf32>
    %6 = vector.shape_cast %5 : vector<1x64x64xf32> to vector<64x64xf32>
    %c0_6 = arith.constant 0 : index
    %c0_7 = arith.constant 0 : index
    %7 = vector.load %arg8[%c0_6, %c0_7] : memref<16x64xf32, #tpu.memory_space<vmem>>, vector<16x64xf32>
    %cst = arith.constant dense<0.000000e+00> : vector<16x64xf32>
    %8 = tpu.matmul %4, %6, %cst {dimension_numbers = #tpu.dot_dimension_numbers<[1], [0], [0], [1], [0, 0, 1, 1], [], []>} : vector<16x64xf32>, vector<64x64xf32>, vector<16x64xf32> -> vector<16x64xf32>
    %9 = arith.addf %7, %8 : vector<16x64xf32>
    %c0_8 = arith.constant 0 : index
    %c0_9 = arith.constant 0 : index
    %10 = vector.load %arg8[%c0_8, %c0_9] : memref<16x64xf32, #tpu.memory_space<vmem>>, vector<16x64xf32>
    tpu.vector_store %arg8[%c0_8, %c0_9], %9 {strides = array<i32>} : memref<16x64xf32, #tpu.memory_space<vmem>>, vector<16x64xf32>,
    %c0_i32_10 = arith.constant 0 : i32
    %11 = arith.cmpi eq, %arg2, %c0_i32_10 : i32
    %12 = arith.extui %11 : i1 to i32
    %c0_i32_11 = arith.constant 0 : i32
    %13 = arith.cmpi ne, %12, %c0_i32_11 : i32
    scf.if %13 {
      %c0_12 = arith.constant 0 : index
      %c0_13 = arith.constant 0 : index
      %14 = vector.load %arg8[%c0_12, %c0_13] : memref<16x64xf32, #tpu.memory_space<vmem>>, vector<16x64xf32>
      %cst_14 = arith.constant 0.000000e+00 : f32
      %15 = vector.broadcast %cst_14 : f32 to vector<16x64xf32>
      %16 = arith.cmpf ogt, %14, %15 : vector<16x64xf32>
      %cst_15 = arith.constant 2.000000e-01 : f32
      %17 = vector.broadcast %cst_15 : f32 to vector<16x64xf32>
      %18 = arith.mulf %17, %14 : vector<16x64xf32>
      %19 = arith.select %16, %14, %18 : vector<16x64xi1>, vector<16x64xf32>
      %c0_16 = arith.constant 0 : index
      %c0_17 = arith.constant 0 : index
      %20 = vector.load %arg5[%c0_16, %c0_17] : memref<32x16xf32, #tpu.memory_space<vmem>>, vector<32x16xf32>
      %cst_18 = arith.constant dense<0.000000e+00> : vector<32x64xf32>
      %21 = tpu.matmul %20, %19, %cst_18 {dimension_numbers = #tpu.dot_dimension_numbers<[1], [0], [0], [1], [0, 0, 1, 1], [], []>} : vector<32x16xf32>, vector<16x64xf32>, vector<32x64xf32> -> vector<32x64xf32>
      %c0_19 = arith.constant 0 : index
      %c0_20 = arith.constant 0 : index
      %22 = vector.load %arg6[%c0_19, %c0_20] : memref<32x1xf32, #tpu.memory_space<vmem>>, vector<32x1xf32>
      %23 = vector.broadcast %22 : vector<32x1xf32> to vector<32x64xf32>
      %24 = arith.addf %21, %23 : vector<32x64xf32>
      %cst_21 = arith.constant 0.000000e+00 : f32
      %25 = vector.broadcast %cst_21 : f32 to vector<32x64xf32>
      %26 = arith.cmpf ogt, %24, %25 : vector<32x64xf32>
      %cst_22 = arith.constant 2.000000e-01 : f32
      %27 = vector.broadcast %cst_22 : f32 to vector<32x64xf32>
      %28 = arith.mulf %27, %24 : vector<32x64xf32>
      %29 = arith.select %26, %24, %28 : vector<32x64xi1>, vector<32x64xf32>
      %c0_23 = arith.constant 0 : index
      %c0_24 = arith.constant 0 : index
      %c0_25 = arith.constant 0 : index
      %30 = vector.load %arg7[%c0_23, %c0_24, %c0_25] : memref<1x32x64xf32, #tpu.memory_space<vmem>>, vector<1x32x64xf32>
      %31 = vector.shape_cast %30 : vector<1x32x64xf32> to vector<32x64xf32>
      %32 = vector.shape_cast %29 : vector<32x64xf32> to vector<1x32x64xf32>
      tpu.vector_store %arg7[%c0_23, %c0_24, %c0_25], %32 {strides = array<i32>} : memref<1x32x64xf32, #tpu.memory_space<vmem>>, vector<1x32x64xf32>,
    } else {
    }
    return
  }
  func.func @transform_0(%arg0: i32, %arg1: i32, %arg2: i32) -> (i32, i32, i32) {
    %c0_i32 = arith.constant 0 : i32
    %c0_i32_0 = arith.constant 0 : i32
    return %arg1, %c0_i32, %arg2 : i32, i32, i32
  }
  func.func @transform_1(%arg0: i32, %arg1: i32, %arg2: i32) -> (i32, i32, i32) {
    %c0_i32 = arith.constant 0 : i32
    return %arg1, %arg2, %arg0 : i32, i32, i32
  }
  func.func @transform_2(%arg0: i32, %arg1: i32, %arg2: i32) -> (i32, i32) {
    %c0_i32 = arith.constant 0 : i32
    %c0_i32_0 = arith.constant 0 : i32
    %c0_i32_1 = arith.constant 0 : i32
    return %c0_i32, %c0_i32_0 : i32, i32
  }
  func.func @transform_3(%arg0: i32, %arg1: i32, %arg2: i32) -> (i32, i32) {
    %c0_i32 = arith.constant 0 : i32
    %c0_i32_0 = arith.constant 0 : i32
    %c0_i32_1 = arith.constant 0 : i32
    return %c0_i32, %c0_i32_0 : i32, i32
  }
  func.func @transform_4(%arg0: i32, %arg1: i32, %arg2: i32) -> (i32, i32, i32) {
    %c0_i32 = arith.constant 0 : i32
    %c0_i32_0 = arith.constant 0 : i32
    return %arg1, %c0_i32, %arg0 : i32, i32, i32
  }
}

</mosaic_0001>

<llo_original>
// kernel: tpu_custom_call.1
$region0: #{tpu_custom_call.1}
  #allocation0 [shape = 'u32[]', space=smem, size = 0x4, offset = 0x4, fixed_abs, tag = 'smem constant byte address 0x4 - core index']
  #allocation1 [shape = 'u32[144,128]{1,0:T(1,128)}', space=vmem, size = 0x12000, scoped, tag = 'internal scratch']
  #allocation2 [shape = 'f32[16,64]{1,0:T(8,128)}', space=vmem, size = 0x2000, scoped, tag = 'scratch operand']
  %s0 = inlined_call_operand.vmem [shape: f32[2,16,64], index: 0, kind: input, shape index: {}]
  %s1 = inlined_call_operand.hbm [shape: f32[2,64,64], index: 1, kind: input, shape index: {}]
  %s2 = inlined_call_operand.vmem [shape: f32[32,16], index: 2, kind: input, shape index: {}]
  %s3 = inlined_call_operand.vmem [shape: f32[32,1], index: 3, kind: input, shape index: {}]
  %s4 = inlined_call_operand.hbm [shape: f32[2,32,64], index: 4, kind: output, shape index: {}]
  %s5 = sld [smem:[#allocation0]]
  $region61: #{tpu_custom_call.1} parent=0
    _
  %s7 = ssub.s32 1, %s5
  %s8 = scalar_select 0, %s7, %s5
  $region1: #{tpu_custom_call.1} parent=0
    #allocation3 [shape = 'u8[65536]{0}', space=vmem, size = 0x10000, scoped, tag = 'input window, operand 1']
    #allocation4 [shape = 's32[2]{0}', space=sflag, size = 0x8, scoped, tag = 'scoped memory for tpu_custom_call.1']
    #allocation5 [shape = 's32[2]{0}', space=sflag, size = 0x8, scoped, tag = 'scoped memory for tpu_custom_call.1']
    #allocation6 [shape = 'u8[32768]{0}', space=vmem, size = 0x8000, scoped, tag = 'output window, operand 0']
    %9 = vsyncpa [#allocation4], 0
    %s10 = scalar_lea.sflag [#allocation4], 1
    %11 = vsyncpa %s10, 0
    %12 = vsyncpa [#allocation5], 0
    %s13 = scalar_lea.sflag [#allocation5], 1
    %14 = vsyncpa %s13, 0
    loop: start=0, step=1, limit=4
    $region2: #{tpu_custom_call.1} parent=1 // loop_pre_header
      _
    $region3: #{tpu_custom_call.1} parent=1 // loop_header
      %s16 = sphi 0, %s20
      %p17 = scmp.ge.s32.totalorder %s16, 4
      %s23 = sphi 0, %s42
      %s24 = sphi 0, %s38
      %s25 = sphi 0, %s34
      %s26 = sphi 0, %s23
      %s27 = sphi 0, %s24
      %s28 = sphi 0, %s25
      %s29 = sphi 0, %s26
      %s30 = sphi 0, %s27
      %s31 = sphi 0, %s28
      %s47 = sphi 0, %s49
      %s50 = sphi 0, %s47
      %s51 = sphi 0, %s50
      %s67 = sphi 0, %s51
      %s77 = sphi 0, %s79
      %s80 = sphi 0, %s77
      %s81 = sphi 0, %s80
      %s97 = sphi 0, %s81
      %s101 = sphi 0, %s101
      %s103 = sphi 0, %s101
      %s104 = sphi 0, %s103
      %s118 = sphi 0, %s104
      %s122 = sphi 0, %s122
      %s124 = sphi 0, %s122
      %s125 = sphi 0, %s124
      %s139 = sphi 0, %s125
      %s147 = sphi 0, %s149
      %s150 = sphi 0, %s147
      %s151 = sphi 0, %s150
      %s167 = sphi 0, %s151
    $region4: #{tpu_custom_call.1} parent=1 // loop_header_branch
      %19 = sbr.rel (%p17) target = $region8
    $region5: #{tpu_custom_call.1} parent=1 // loop_body
      %s21 = ssub.s32 %s16, 1
      %s22 = ssub.s32 %s16, 2
      %s32 = sadd.s32 1, %s25
      %p33 = scmp.ge.s32.totalorder %s32, 1
      %s34 = scalar_select %p33, 0, %s32
      %s35 = sadd.s32 1, %s24
      %s36 = scalar_select %p33, %s35, %s24
      %p37 = scmp.ge.s32.totalorder %s36, 2
      %s38 = scalar_select %p37, 0, %s36
      %s39 = sadd.s32 1, %s23
      %s40 = scalar_select %p37, %s39, %s23
      %p41 = scmp.ge.s32.totalorder %s40, 1
      %s42 = scalar_select %p41, 0, %s40
      %s43 = ssub.s32 %s24, %s38
      %s44 = ssub.s32 %s25, %s34
      %s45 = sor.u32 %s43, %s44
      %p46 = scmp.eq.s32.totalorder %s45, 0
      %s48 = sadd.s32 %s47, 1
      %s49 = scalar_select %p46, %s47, %s48
      %p52 = pneg %p46
      %p53 = scmp.eq.s32.totalorder %s16, 1
      %p54 = por %p52, %p53
      %p55 = scmp.ne.s32.totalorder %s47, %s50
      %p56 = scmp.eq.s32.totalorder %s16, 0
      %p57 = por %p55, %p56
      %p58 = scmp.ne.s32.totalorder %s47, %s50
      %p59 = scmp.eq.s32.totalorder %s21, 1
      %p60 = por %p58, %p59
      %p61 = scmp.ne.s32.totalorder %s50, %s51
      %p62 = scmp.eq.s32.totalorder %s21, 0
      %p63 = por %p61, %p62
      %p64 = scmp.ne.s32.totalorder %s50, %s51
      %p65 = scmp.eq.s32.totalorder %s22, 1
      %p66 = por %p64, %p65
      %p68 = scmp.ne.s32.totalorder %s51, %s67
      %p69 = scmp.eq.s32.totalorder %s22, 0
      %p70 = por %p68, %p69
      %s71 = ssub.s32 %s24, %s38
      %s72 = ssub.s32 %s25, %s34
      %s73 = sor.u32 %s71, %s72
      %s74 = ssub.s32 %s23, %s42
      %s75 = sor.u32 %s73, %s74
      %p76 = scmp.eq.s32.totalorder %s75, 0
      %s78 = sadd.s32 %s77, 1
      %s79 = scalar_select %p76, %s77, %s78
      %p82 = pneg %p76
      %p83 = scmp.eq.s32.totalorder %s16, 1
      %p84 = por %p82, %p83
      %p85 = scmp.ne.s32.totalorder %s77, %s80
      %p86 = scmp.eq.s32.totalorder %s16, 0
      %p87 = por %p85, %p86
      %p88 = scmp.ne.s32.totalorder %s77, %s80
      %p89 = scmp.eq.s32.totalorder %s21, 1
      %p90 = por %p88, %p89
      %p91 = scmp.ne.s32.totalorder %s80, %s81
      %p92 = scmp.eq.s32.totalorder %s21, 0
      %p93 = por %p91, %p92
      %p94 = scmp.ne.s32.totalorder %s80, %s81
      %p95 = scmp.eq.s32.totalorder %s22, 1
      %p96 = por %p94, %p95
      %p98 = scmp.ne.s32.totalorder %s81, %s97
      %p99 = scmp.eq.s32.totalorder %s22, 0
      %p100 = por %p98, %p99
      %s102 = sadd.s32 %s101, 1
      %p105 = scmp.eq.s32.totalorder %s16, 1
      %p106 = scmp.ne.s32.totalorder %s101, %s103
      %p107 = scmp.eq.s32.totalorder %s16, 0
      %p108 = por %p106, %p107
      %p109 = scmp.ne.s32.totalorder %s101, %s103
      %p110 = scmp.eq.s32.totalorder %s21, 1
      %p111 = por %p109, %p110
      %p112 = scmp.ne.s32.totalorder %s103, %s104
      %p113 = scmp.eq.s32.totalorder %s21, 0
      %p114 = por %p112, %p113
      %p115 = scmp.ne.s32.totalorder %s103, %s104
      %p116 = scmp.eq.s32.totalorder %s22, 1
      %p117 = por %p115, %p116
      %p119 = scmp.ne.s32.totalorder %s104, %s118
      %p120 = scmp.eq.s32.totalorder %s22, 0
      %p121 = por %p119, %p120
      %s123 = sadd.s32 %s122, 1
      %p126 = scmp.eq.s32.totalorder %s16, 1
      %p127 = scmp.ne.s32.totalorder %s122, %s124
      %p128 = scmp.eq.s32.totalorder %s16, 0
      %p129 = por %p127, %p128
      %p130 = scmp.ne.s32.totalorder %s122, %s124
      %p131 = scmp.eq.s32.totalorder %s21, 1
      %p132 = por %p130, %p131
      %p133 = scmp.ne.s32.totalorder %s124, %s125
      %p134 = scmp.eq.s32.totalorder %s21, 0
      %p135 = por %p133, %p134
      %p136 = scmp.ne.s32.totalorder %s124, %s125
      %p137 = scmp.eq.s32.totalorder %s22, 1
      %p138 = por %p136, %p137
      %p140 = scmp.ne.s32.totalorder %s125, %s139
      %p141 = scmp.eq.s32.totalorder %s22, 0
      %p142 = por %p140, %p141
      %s143 = ssub.s32 %s24, %s38
      %s144 = ssub.s32 %s23, %s42
      %s145 = sor.u32 %s143, %s144
      %p146 = scmp.eq.s32.totalorder %s145, 0
      %s148 = sadd.s32 %s147, 1
      %s149 = scalar_select %p146, %s147, %s148
      %p152 = pneg %p146
      %p153 = scmp.eq.s32.totalorder %s16, 1
      %p154 = por %p152, %p153
      %p155 = scmp.ne.s32.totalorder %s147, %s150
      %p156 = scmp.eq.s32.totalorder %s16, 0
      %p157 = por %p155, %p156
      %p158 = scmp.ne.s32.totalorder %s147, %s150
      %p159 = scmp.eq.s32.totalorder %s21, 1
      %p160 = por %p158, %p159
      %p161 = scmp.ne.s32.totalorder %s150, %s151
      %p162 = scmp.eq.s32.totalorder %s21, 0
      %p163 = por %p161, %p162
      %p164 = scmp.ne.s32.totalorder %s150, %s151
      %p165 = scmp.eq.s32.totalorder %s22, 1
      %p166 = por %p164, %p165
      %p168 = scmp.ne.s32.totalorder %s151, %s167
      %p169 = scmp.eq.s32.totalorder %s22, 0
      %p170 = por %p168, %p169
      %p171 = scmp.le.s32.totalorder 1, %s16
      %p172 = scmp.lt.s32.totalorder %s16, 3
      %p173 = pnand %p171, %p172
      %p174 = pneg %p173
      // Predicated region
      $region9: #{tpu_custom_call.1} parent=5 // pred_check
        _
      $region10: #{tpu_custom_call.1} parent=5 // pred_check_branch
        %176 = sbr.rel (%p173) target = $region12
      $region11: #{tpu_custom_call.1} parent=5 // pred_region
        %s177 = ssub.s32 %s16, 1
        // Predicated region
        $region13: #{tpu_custom_call.1} parent=11 // pred_check
          %p178 = pneg %p114
        $region14: #{tpu_custom_call.1} parent=11 // pred_check_branch
          %180 = sbr.rel (%p178) target = $region16
        $region15: #{tpu_custom_call.1} parent=11 // pred_region
          _
        $region16: #{tpu_custom_call.1} parent=11 // pred_fallthru
          _
        // Predicated region
        $region17: #{tpu_custom_call.1} parent=11 // pred_check
          %p181 = pneg %p135
        $region18: #{tpu_custom_call.1} parent=11 // pred_check_branch
          %183 = sbr.rel (%p181) target = $region20
        $region19: #{tpu_custom_call.1} parent=11 // pred_region
          _
        $region20: #{tpu_custom_call.1} parent=11 // pred_fallthru
          _
      $region12: #{tpu_custom_call.1} parent=5 // pred_fallthru
        _
      %p184 = scmp.lt.s32.totalorder %s16, 2
      // Predicated region
      $region21: #{tpu_custom_call.1} parent=5 // pred_check
        %p185 = pneg %p184
      $region22: #{tpu_custom_call.1} parent=5 // pred_check_branch
        %187 = sbr.rel (%p185) target = $region24
      $region23: #{tpu_custom_call.1} parent=5 // pred_region
        // Predicated region
        $region25: #{tpu_custom_call.1} parent=23 // pred_check
          %p188 = pneg %p57
        $region26: #{tpu_custom_call.1} parent=23 // pred_check_branch
          %190 = sbr.rel (%p188) target = $region28
        $region27: #{tpu_custom_call.1} parent=23 // pred_region
          %p191 = scmp.lt.s32.totalorder %s24, 1
          %s192 = scalar_select %p191, %s24, 1
          %p193 = scmp.lt.s32.totalorder %s25, 0
          %s194 = scalar_select %p193, %s25, 0
          %s195 = smul.addr %s192, 2
          %s196 = sadd.s32 %s194, %s195
          %s197 = smul.addr %s196, 8
          %s198 = scalar_lea.vmem %s0, %s197
        $region28: #{tpu_custom_call.1} parent=23 // pred_fallthru
          _
        // Predicated region
        $region29: #{tpu_custom_call.1} parent=23 // pred_check
          %p199 = pneg %p87
        $region30: #{tpu_custom_call.1} parent=23 // pred_check_branch
          %201 = sbr.rel (%p199) target = $region32
        $region31: #{tpu_custom_call.1} parent=23 // pred_region
          %s202 = sand.u32 %s77, 1
          %s203 = scalar_lea.sflag [#allocation4], %s202
          %s204 = sand.u32 %s77, 1
          %s205 = smul.addr %s204, 64
          %s206 = scalar_lea.vmem [#allocation3], %s205
          %s207 = smul.u32 8, %s25
          %s209 = ssub.s32 1024, 1024
          %210 = vsyncadd %s203, %s209
          %s211 = sadd.s32 %s23, %s207
          %s212 = smul.addr %s24, 8
          %s213 = sadd.s32 %s211, %s212
          %s214 = smul.addr %s213, 128
          %s215 = scalar_lea.hbm %s1, %s214
          %s216 = sshll.u32 %s206, 4
          %s217 = int_to_ptr.vmem [resolvable:$true] %s216
          %222 = dma.hbm_to_vmem [thread:$0]  %s215, 1024, %s217, %s203, 128, 128, 8
        $region32: #{tpu_custom_call.1} parent=23 // pred_fallthru
          _
      $region24: #{tpu_custom_call.1} parent=5 // pred_fallthru
        _
      %p223 = scmp.le.s32.totalorder 1, %s16
      %p224 = scmp.lt.s32.totalorder %s16, 3
      %p225 = pnand %p223, %p224
      %p226 = pneg %p225
      // Predicated region
      $region33: #{tpu_custom_call.1} parent=5 // pred_check
        _
      $region34: #{tpu_custom_call.1} parent=5 // pred_check_branch
        %228 = sbr.rel (%p225) target = $region36
      $region35: #{tpu_custom_call.1} parent=5 // pred_region
        %s229 = ssub.s32 %s16, 1
        %s230 = sand.u32 %s80, 1
        %s231 = scalar_lea.sflag [#allocation4], %s230
        %s232 = sand.u32 %s80, 1
        %s233 = smul.addr %s232, 64
        %s234 = scalar_lea.vmem [#allocation3], %s233
        // Predicated region
        $region37: #{tpu_custom_call.1} parent=35 // pred_check
          %p235 = pneg %p93
        $region38: #{tpu_custom_call.1} parent=35 // pred_check_branch
          %237 = sbr.rel (%p235) target = $region40
        $region39: #{tpu_custom_call.1} parent=35 // pred_region
          %238 = dma.done %s231, 1024
        $region40: #{tpu_custom_call.1} parent=35 // pred_fallthru
          _
        %p239 = scmp.lt.s32.totalorder %s27, 1
        %s240 = scalar_select %p239, %s27, 1
        %p241 = scmp.lt.s32.totalorder %s28, 0
        %s242 = scalar_select %p241, %s28, 0
        %s243 = smul.addr %s240, 2
        %s244 = sadd.s32 %s242, %s243
        %s245 = smul.addr %s244, 8
        %s246 = scalar_lea.vmem %s0, %s245
        %p247 = pneg %p63
        %p248 = pneg %p60
        %s249 = sand.u32 %s80, 1
        %s250 = scalar_lea.sflag [#allocation4], %s249
        %s251 = sand.u32 %s80, 1
        %s252 = smul.addr %s251, 64
        %s253 = scalar_lea.vmem [#allocation3], %s252
        %p254 = pneg %p93
        %p255 = pneg %p90
        %p256 = pneg %p114
        %p257 = pneg %p111
        %p258 = pneg %p135
        %p259 = pneg %p132
        %p260 = pneg %p163
        %p261 = pneg %p160
        %s262 = sand.u32 %s150, 1
        %s263 = scalar_lea.sflag [#allocation5], %s262
        %s264 = sand.u32 %s150, 1
        %s265 = smul.addr %s264, 32
        %s266 = scalar_lea.vmem [#allocation6], %s265
        %p267 = scmp.lt.s32.totalorder %s27, 1
        %s268 = scalar_select %p267, %s27, 1
        %p269 = scmp.lt.s32.totalorder %s28, 0
        %s270 = scalar_select %p269, %s28, 0
        %s271 = smul.addr %s268, 2
        %s272 = sadd.s32 %s270, %s271
        %s273 = smul.addr %s272, 8
        %s274 = scalar_lea.vmem %s0, %s273
        %s275 = smul.u32 8, %s28
        %p276 = scmp.eq.s32.totalorder %s28, 0
        // Predicated region
        $region41: #{tpu_custom_call.1} parent=35 // pred_check
          %p277 = pneg %p276
        $region42: #{tpu_custom_call.1} parent=35 // pred_check_branch
          %279 = sbr.rel (%p277) target = $region44
        $region43: #{tpu_custom_call.1} parent=35 // pred_region
          %vm280 = vcmask 523264
          %281 = vst.msk [vmem:[#allocation2] sm:$0xff] %vm280, 0.0
          %282 = vst.msk [vmem:[#allocation2 + $0x8] sm:$0xff] %vm280, 0.0
        $region44: #{tpu_custom_call.1} parent=35 // pred_fallthru
          _
        %v283 = vld [vmem:[%s274] sm:$0xff]
        %v284 = vld [vmem:[%s274 + $0x8] sm:$0xff]
        %v285 = vld [vmem:[%s234] sm:$0xff]
        %v286 = vld [vmem:[%s234 + $0x8] sm:$0xff]
        %v287 = vld [vmem:[%s234 + $0x10] sm:$0xff]
        %v288 = vld [vmem:[%s234 + $0x18] sm:$0xff]
        %v289 = vld [vmem:[%s234 + $0x20] sm:$0xff]
        %v290 = vld [vmem:[%s234 + $0x28] sm:$0xff]
        %v291 = vld [vmem:[%s234 + $0x30] sm:$0xff]
        %v292 = vld [vmem:[%s234 + $0x38] sm:$0xff]
        %v293 = vld [vmem:[#allocation2] sm:$0xff]
        %v294 = vld [vmem:[#allocation2 + $0x8] sm:$0xff]
        %vm295 = vcmask 523264
        %v297 = vsel %vm295, %v283, 0
        %v300 = vsel %vm295, %v284, 0
        %302 = vmatprep.subr.mxu0 0.0
        %303 = vmatpush1.msra.mxu0 %v285
        %304 = vmatprep.subr.mxu0 0.0
        %305 = vmatpush1.msra.mxu0 %v286
        %306 = vmatprep.subr.mxu0 0.0
        %307 = vmatpush1.msra.mxu0 %v287
        %308 = vmatprep.subr.mxu0 0.0
        %309 = vmatpush1.msra.mxu0 %v288
        %310 = vmatprep.subr.mxu0 0.0
        %311 = vmatpush1.msra.mxu0 %v289
        %312 = vmatprep.subr.mxu0 0.0
        %313 = vmatpush1.msra.mxu0 %v290
        %314 = vmatprep.subr.mxu0 0.0
        %315 = vmatpush1.msra.mxu0 %v291
        %316 = vmatprep.subr.mxu0 0.0
        %317 = vmatpush1.msra.mxu0 %v292
        %318 = vmatprep.subr.mxu0 0.0
        %319 = vmatpush1.msra.mxu0 0.0
        %320 = vmatprep.subr.mxu0 0.0
        %321 = vmatpush1.msra.mxu0 0.0
        %322 = vmatprep.subr.mxu0 0.0
        %323 = vmatpush1.msra.mxu0 0.0
        %324 = vmatprep.subr.mxu0 0.0
        %325 = vmatpush1.msra.mxu0 0.0
        %326 = vmatprep.subr.mxu0 0.0
        %327 = vmatpush1.msra.mxu0 0.0
        %328 = vmatprep.subr.mxu0 0.0
        %329 = vmatpush1.msra.mxu0 0.0
        %330 = vmatprep.subr.mxu0 0.0
        %331 = vmatpush1.msra.mxu0 0.0
        %332 = vmatprep.subr.mxu0 0.0
        %333 = vmatpush1.msra.mxu0 0.0
        %334 = vmatprep.subr.mxu0 0.0
        %335 = vmatpush1.msra.mxu0 0.0
        %336 = vmatprep.subr.mxu0 0.0
        %337 = vmatpush1.msra.mxu0 0.0
        %338 = vmatprep.subr.mxu0 0.0
        %339 = vmatpush1.msra.mxu0 0.0
        %340 = vmatprep.subr.mxu0 0.0
        %341 = vmatpush1.msra.mxu0 0.0
        %342 = vmatprep.subr.mxu0 0.0
        %343 = vmatpush1.msra.mxu0 0.0
        %344 = vmatprep.subr.mxu0 0.0
        %345 = vmatpush1.msra.mxu0 0.0
        %346 = vmatprep.subr.mxu0 0.0
        %347 = vmatpush1.msra.mxu0 0.0
        %348 = vmatprep.subr.mxu0 0.0
        %349 = vmatpush1.msra.mxu0 0.0
        %350 = vmatprep.subr.mxu0 0.0
        %351 = vmatpush1.msra.mxu0 0.0
        %352 = vmatprep.subr.mxu0 0.0
        %353 = vmatpush1.msra.mxu0 0.0
        %354 = vmatprep.subr.mxu0 0.0
        %355 = vmatpush1.msra.mxu0 0.0
        %356 = vmatprep.subr.mxu0 0.0
        %357 = vmatpush1.msra.mxu0 0.0
        %358 = vmatprep.subr.mxu0 0.0
        %359 = vmatpush1.msra.mxu0 0.0
        %360 = vmatprep.subr.mxu0 0.0
        %361 = vmatpush1.msra.mxu0 0.0
        %362 = vmatprep.subr.mxu0 0.0
        %363 = vmatpush1.msra.mxu0 0.0
        %364 = vmatprep.subr.mxu0 0.0
        %365 = vmatpush1.msra.mxu0 0.0
        %366 = vmatprep.mubr.f32.mxu0 0.0
        %367 = vmatmul.mubr.f32.gmra.mrb[0].mxu0 %v297
        %v368 = vpop.f32.mrb[0].mxu0
        %v369 = vadd.f32 0.0, %v368
        %v370 = vpop.f32.mrb[0].mxu0
        %371 = vmatprep.mubr.f32.mxu0 0.0
        %372 = vmatmul.mubr.f32.gmra.mrb[0].mxu0 %v300
        %v373 = vpop.f32.mrb[0].mxu0
        %v374 = vadd.f32 0.0, %v373
        %v375 = vpop.f32.mrb[0].mxu0
        %376 = vdwg.mxu0
        %v377 = vadd.f32 %v293, %v369
        %v378 = vadd.f32 %v294, %v374
        %379 = vst.msk [vmem:[#allocation2] sm:$0xff] %vm295, %v377
        %380 = vst.msk [vmem:[#allocation2 + $0x8] sm:$0xff] %vm295, %v378
        // Predicated region
        $region45: #{tpu_custom_call.1} parent=35 // pred_check
          %p381 = pneg %p276
        $region46: #{tpu_custom_call.1} parent=35 // pred_check_branch
          %383 = sbr.rel (%p381) target = $region48
        $region47: #{tpu_custom_call.1} parent=35 // pred_region
          %v384 = vld [vmem:[#allocation2] sm:$0xff]
          %v385 = vld [vmem:[#allocation2 + $0x8] sm:$0xff]
          %vm386 = vcmp.gt.f32.partialorder %v384, 0.0
          %vm387 = vcmp.gt.f32.partialorder %v385, 0.0
          %v388 = vmul.f32 %v384, 0.2
          %v389 = vmul.f32 %v385, 0.2
          %v390 = vsel %vm386, %v384, %v388
          %v391 = vsel %vm387, %v385, %v389
          %v392 = vld [vmem:[%s2] sm:$0xff]
          %v393 = vld [vmem:[%s2 + $0x8] sm:$0xff]
          %v394 = vld [vmem:[%s2 + $0x10] sm:$0xff]
          %v395 = vld [vmem:[%s2 + $0x18] sm:$0xff]
          %v396 = vld [vmem:[%s3] sm:$0xff]
          %v397 = vld [vmem:[%s3 + $0x8] sm:$0xff]
          %v398 = vld [vmem:[%s3 + $0x10] sm:$0xff]
          %v399 = vld [vmem:[%s3 + $0x18] sm:$0xff]
          %401 = vset.pattern.permute.xlu0 0
          %402 = vperm.xlu0 %401, %v396
          %v403 = vpop.permute.xlu0 %402
          %406 = vset.pattern.permute.xlu0 0
          %407 = vperm.xlu0 %406, %v397
          %v408 = vpop.permute.xlu0 %407
          %411 = vset.pattern.permute.xlu0 0
          %412 = vperm.xlu0 %411, %v398
          %v413 = vpop.permute.xlu0 %412
          %416 = vset.pattern.permute.xlu0 0
          %417 = vperm.xlu0 %416, %v399
          %v418 = vpop.permute.xlu0 %417
          %vm420 = vcmask 130048
          %v422 = vsel %vm420, %v392, 0
          %v425 = vsel %vm420, %v393, 0
          %v428 = vsel %vm420, %v394, 0
          %v431 = vsel %vm420, %v395, 0
          %433 = vmatprep.subr.mxu0 0.0
          %434 = vmatpush1.msra.mxu0 %v390
          %435 = vmatprep.subr.mxu0 0.0
          %436 = vmatpush1.msra.mxu0 %v391
          %437 = vmatprep.subr.mxu0 0.0
          %438 = vmatpush1.msra.mxu0 0.0
          %439 = vmatprep.subr.mxu0 0.0
          %440 = vmatpush1.msra.mxu0 0.0
          %441 = vmatprep.subr.mxu0 0.0
          %442 = vmatpush1.msra.mxu0 0.0
          %443 = vmatprep.subr.mxu0 0.0
          %444 = vmatpush1.msra.mxu0 0.0
          %445 = vmatprep.subr.mxu0 0.0
          %446 = vmatpush1.msra.mxu0 0.0
          %447 = vmatprep.subr.mxu0 0.0
          %448 = vmatpush1.msra.mxu0 0.0
          %449 = vmatprep.subr.mxu0 0.0
          %450 = vmatpush1.msra.mxu0 0.0
          %451 = vmatprep.subr.mxu0 0.0
          %452 = vmatpush1.msra.mxu0 0.0
          %453 = vmatprep.subr.mxu0 0.0
          %454 = vmatpush1.msra.mxu0 0.0
          %455 = vmatprep.subr.mxu0 0.0
          %456 = vmatpush1.msra.mxu0 0.0
          %457 = vmatprep.subr.mxu0 0.0
          %458 = vmatpush1.msra.mxu0 0.0
          %459 = vmatprep.subr.mxu0 0.0
          %460 = vmatpush1.msra.mxu0 0.0
          %461 = vmatprep.subr.mxu0 0.0
          %462 = vmatpush1.msra.mxu0 0.0
          %463 = vmatprep.subr.mxu0 0.0
          %464 = vmatpush1.msra.mxu0 0.0
          %465 = vmatprep.subr.mxu0 0.0
          %466 = vmatpush1.msra.mxu0 0.0
          %467 = vmatprep.subr.mxu0 0.0
          %468 = vmatpush1.msra.mxu0 0.0
          %469 = vmatprep.subr.mxu0 0.0
          %470 = vmatpush1.msra.mxu0 0.0
          %471 = vmatprep.subr.mxu0 0.0
          %472 = vmatpush1.msra.mxu0 0.0
          %473 = vmatprep.subr.mxu0 0.0
          %474 = vmatpush1.msra.mxu0 0.0
          %475 = vmatprep.subr.mxu0 0.0
          %476 = vmatpush1.msra.mxu0 0.0
          %477 = vmatprep.subr.mxu0 0.0
          %478 = vmatpush1.msra.mxu0 0.0
          %479 = vmatprep.subr.mxu0 0.0
          %480 = vmatpush1.msra.mxu0 0.0
          %481 = vmatprep.subr.mxu0 0.0
          %482 = vmatpush1.msra.mxu0 0.0
          %483 = vmatprep.subr.mxu0 0.0
          %484 = vmatpush1.msra.mxu0 0.0
          %485 = vmatprep.subr.mxu0 0.0
          %486 = vmatpush1.msra.mxu0 0.0
          %487 = vmatprep.subr.mxu0 0.0
          %488 = vmatpush1.msra.mxu0 0.0
          %489 = vmatprep.subr.mxu0 0.0
          %490 = vmatpush1.msra.mxu0 0.0
          %491 = vmatprep.subr.mxu0 0.0
          %492 = vmatpush1.msra.mxu0 0.0
          %493 = vmatprep.subr.mxu0 0.0
          %494 = vmatpush1.msra.mxu0 0.0
          %495 = vmatprep.subr.mxu0 0.0
          %496 = vmatpush1.msra.mxu0 0.0
          %497 = vmatprep.mubr.f32.mxu0 0.0
          %498 = vmatmul.mubr.f32.gmra.mrb[0].mxu0 %v422
          %v499 = vpop.f32.mrb[0].mxu0
          %v500 = vadd.f32 %v403, %v499
          %v501 = vpop.f32.mrb[0].mxu0
          %502 = vmatprep.mubr.f32.mxu0 0.0
          %503 = vmatmul.mubr.f32.gmra.mrb[0].mxu0 %v425
          %v504 = vpop.f32.mrb[0].mxu0
          %v505 = vadd.f32 %v408, %v504
          %v506 = vpop.f32.mrb[0].mxu0
          %507 = vmatprep.mubr.f32.mxu0 0.0
          %508 = vmatmul.mubr.f32.gmra.mrb[0].mxu0 %v428
          %v509 = vpop.f32.mrb[0].mxu0
          %v510 = vadd.f32 %v413, %v509
          %v511 = vpop.f32.mrb[0].mxu0
          %512 = vmatprep.mubr.f32.mxu0 0.0
          %513 = vmatmul.mubr.f32.gmra.mrb[0].mxu0 %v431
          %v514 = vpop.f32.mrb[0].mxu0
          %v515 = vadd.f32 %v418, %v514
          %v516 = vpop.f32.mrb[0].mxu0
          %517 = vdwg.mxu0
          %vm518 = vcmp.gt.f32.partialorder %v500, 0.0
          %vm519 = vcmp.gt.f32.partialorder %v505, 0.0
          %vm520 = vcmp.gt.f32.partialorder %v510, 0.0
          %vm521 = vcmp.gt.f32.partialorder %v515, 0.0
          %v522 = vmul.f32 %v500, 0.2
          %v523 = vmul.f32 %v505, 0.2
          %v524 = vmul.f32 %v510, 0.2
          %v525 = vmul.f32 %v515, 0.2
          %v526 = vsel %vm518, %v500, %v522
          %v527 = vsel %vm519, %v505, %v523
          %v528 = vsel %vm520, %v510, %v524
          %v529 = vsel %vm521, %v515, %v525
          %530 = vst.msk [vmem:[%s266] sm:$0xff] %vm295, %v526
          %531 = vst.msk [vmem:[%s266 + $0x8] sm:$0xff] %vm295, %v527
          %532 = vst.msk [vmem:[%s266 + $0x10] sm:$0xff] %vm295, %v528
          %533 = vst.msk [vmem:[%s266 + $0x18] sm:$0xff] %vm295, %v529
        $region48: #{tpu_custom_call.1} parent=35 // pred_fallthru
          _
        %s534 = sand.u32 %s150, 1
        %s535 = scalar_lea.sflag [#allocation5], %s534
        %s536 = sand.u32 %s150, 1
        %s537 = smul.addr %s536, 32
        %s538 = scalar_lea.vmem [#allocation6], %s537
        // Predicated region
        $region49: #{tpu_custom_call.1} parent=35 // pred_check
          %p539 = pneg %p160
        $region50: #{tpu_custom_call.1} parent=35 // pred_check_branch
          %541 = sbr.rel (%p539) target = $region52
        $region51: #{tpu_custom_call.1} parent=35 // pred_region
          %s543 = ssub.s32 512, 512
          %544 = vsyncadd %s535, %s543
          %s545 = smul.addr %s27, 4
          %s546 = sadd.s32 %s26, %s545
          %s547 = smul.addr %s546, 128
          %s548 = scalar_lea.hbm %s4, %s547
          %s549 = sshll.u32 %s538, 4
          %s550 = int_to_ptr.vmem [resolvable:$true] %s549
          %555 = dma.vmem_to_hbm [thread:$0]  %s550, 512, %s548, %s535, 128, 128, 8
        $region52: #{tpu_custom_call.1} parent=35 // pred_fallthru
          _
      $region36: #{tpu_custom_call.1} parent=5 // pred_fallthru
        _
      %p556 = scmp.le.s32.totalorder 2, %s16
      // Predicated region
      $region53: #{tpu_custom_call.1} parent=5 // pred_check
        %p557 = pneg %p556
      $region54: #{tpu_custom_call.1} parent=5 // pred_check_branch
        %559 = sbr.rel (%p557) target = $region56
      $region55: #{tpu_custom_call.1} parent=5 // pred_region
        %s560 = ssub.s32 %s16, 2
        // Predicated region
        $region57: #{tpu_custom_call.1} parent=55 // pred_check
          %p561 = pneg %p166
        $region58: #{tpu_custom_call.1} parent=55 // pred_check_branch
          %563 = sbr.rel (%p561) target = $region60
        $region59: #{tpu_custom_call.1} parent=55 // pred_region
          %s564 = sand.u32 %s151, 1
          %s565 = scalar_lea.sflag [#allocation5], %s564
          %s566 = sand.u32 %s151, 1
          %s567 = smul.addr %s566, 32
          %s568 = scalar_lea.vmem [#allocation6], %s567
          %569 = dma.done %s565, 512
        $region60: #{tpu_custom_call.1} parent=55 // pred_fallthru
          _
      $region56: #{tpu_custom_call.1} parent=5 // pred_fallthru
        _
    $region6: #{tpu_custom_call.1} parent=1 // loop_footer
      %s20 = sadd.s32 1, %s16
    $region7: #{tpu_custom_call.1} parent=1 // loop_footer_branch
      %15 = sbr.rel target = $region3
    $region8: #{tpu_custom_call.1} parent=1 // loop_exit
      _
    %570 = vsyncpa [#allocation4], 1
    %s571 = scalar_lea.sflag [#allocation4], 1
    %572 = vsyncpa %s571, 1
    %573 = vsyncpa [#allocation5], 1
    %s574 = scalar_lea.sflag [#allocation5], 1
    %575 = vsyncpa %s574, 1

</llo_original>
